<compile_context>
chip_gen: v6e
topology: v6e:2x2x1
jax: 0.10.0
libtpu: 0.0.40
codegen_flags: <defaults>
</compile_context>

<pallas_src>
import jax
import jax.numpy as jnp
from jax.experimental import pallas as pl
from jax.experimental.pallas import tpu as pltpu


def _round_up(x, m):
    return (x + m - 1) // m * m


def _cdiv(a, b):
    return -(-a // b)


def _choose_tile(B, max_tile):
    # >= 2 tiles whenever the batch is big enough (v7x dual-TC sharding of the
    # "parallel" axis), tiles as large as possible (amortize the ~0.35 us/step
    # grid overhead), TB a multiple of 128 (lane-dense output stores), and
    # bounded pad waste (< 128 rows per tile).
    n_tiles = max(2, _cdiv(B, max_tile))
    tb = _round_up(_cdiv(B, n_tiles), 128)
    return min(tb, max_tile)


def deepncf_kernel(u_ref, m_ref, f_ref, wu_ref, wm_ref, wf_ref,
                   b1_ref, w2_ref, b2_ref, out_ref):
    # hidden = ReLU(u@W1u + m@W1m + feat@(Wf@W1f) + b1')
    # Three sub-K MXU matmuls accumulated in f32 (no concat slab needed).
    h = jnp.dot(u_ref[...], wu_ref[...], preferred_element_type=jnp.float32)
    h += jnp.dot(m_ref[...], wm_ref[...], preferred_element_type=jnp.float32)
    h += jnp.dot(f_ref[...], wf_ref[...], preferred_element_type=jnp.float32)
    h = jnp.maximum(h + b1_ref[...], 0.0)

    # Final Linear(128, 1): VPU multiply + cross-lane reduce (an N=1 MXU matmul
    # would waste the array); scalar bias lives in SMEM.
    o = jnp.sum(h * w2_ref[...], axis=-1) + b2_ref[0]      # [TB] f32
    # Lane-dense store: one (1, 1, TB) row per grid step.
    out_ref[...] = o[None, None, :]


def prepare_fused_params(params):
    """One-time preparation (cache outside the per-call forward):
    fold the feature Linear into the first hidden Linear (exact identity)
    and pre-cast the streaming weights/tables."""
    E = params["user_emb"].shape[1]
    H = params["w1"].shape[1]
    w1 = params["w1"]                               # (3E, H), pre-transposed
    w1u, w1m, w1f = w1[:E], w1[E:2 * E], w1[2 * E:]
    wf_fold = params["wf"] @ w1f                    # (F, H)
    b1_fold = params["b1"] + params["bf"] @ w1f     # (1, H)
    return {
        "user_emb": params["user_emb"].astype(jnp.bfloat16),
        "movie_emb": params["movie_emb"].astype(jnp.bfloat16),
        "w1u": w1u.astype(jnp.bfloat16),
        "w1m": w1m.astype(jnp.bfloat16),
        # Feature path kept in f32: raw features may have large dynamic range.
        "wf_fold": wf_fold.astype(jnp.float32),
        "b1_fold": b1_fold.astype(jnp.float32),
        "w2_row": params["w2"].reshape(1, H).astype(jnp.float32),
        "b2": params["b2"].reshape(1).astype(jnp.float32),
    }


def deepncf_forward(user_ids, movie_ids, movie_features, fused, *, max_tile=4096):
    """Pallas-backed DeepNCF forward. Returns [B] ratings."""
    # --- glue: embedding gathers on bf16 tables ---
    # TODO(synk): for production-sized tables, fuse the gather into the kernel
    # (PrefetchScalarGridSpec ids + manual make_async_copy row gather from
    # pl.ANY HBM refs) so the [B, E] gathered vectors never touch HBM.
    u = jnp.take(fused["user_emb"], user_ids, axis=0)       # [B, E] bf16
    m = jnp.take(fused["movie_emb"], movie_ids, axis=0)     # [B, E] bf16
    f = movie_features.astype(jnp.float32)                  # [B, F] f32

    B, E = u.shape
    F = f.shape[1]
    H = fused["w1u"].shape[1]

    TB = _choose_tile(B, max_tile)
    B_pad = _round_up(B, TB)
    pad = B_pad - B
    if pad:
        u = jnp.pad(u, ((0, pad), (0, 0)))
        m = jnp.pad(m, ((0, pad), (0, 0)))
        f = jnp.pad(f, ((0, pad), (0, 0)))
    nt = B_pad // TB

    out = pl.pallas_call(
        deepncf_kernel,
        out_shape=jax.ShapeDtypeStruct((nt, 1, TB), jnp.float32),
        grid=(nt,),
        in_specs=[
            pl.BlockSpec((TB, E), lambda i: (i, 0)),            # user vecs  (pipelined)
            pl.BlockSpec((TB, E), lambda i: (i, 0)),            # movie vecs (pipelined)
            pl.BlockSpec((TB, F), lambda i: (i, 0)),            # features   (pipelined)
            pl.BlockSpec((E, H), lambda i: (0, 0)),             # W1u        (resident)
            pl.BlockSpec((E, H), lambda i: (0, 0)),             # W1m        (resident)
            pl.BlockSpec((F, H), lambda i: (0, 0)),             # Wf@W1f     (resident)
            pl.BlockSpec((1, H), lambda i: (0, 0)),             # folded bias(resident)
            pl.BlockSpec((1, H), lambda i: (0, 0)),             # w2 row     (resident)
            pl.BlockSpec(memory_space=pltpu.MemorySpace.SMEM),  # b2 scalar
        ],
        out_specs=pl.BlockSpec((1, 1, TB), lambda i: (i, 0, 0)),
        compiler_params=pltpu.CompilerParams(
            dimension_semantics=("parallel",)),
    )(u, m, f, fused["w1u"], fused["w1m"], fused["wf_fold"],
      fused["b1_fold"], fused["w2_row"], fused["b2"])

    return out.reshape(B_pad)[:B]


def init_params(key, n_users, n_movies, movie_feature_dim, embedding_dim=32,
                hidden=128):
    """Deterministic synthetic init matching the module's parameter shapes.
    Linear weights stored pre-transposed as (in, out); biases as (1, out)."""
    ks = jax.random.split(key, 8)
    E, F, H = embedding_dim, movie_feature_dim, hidden
    return {
        "user_emb": jax.random.normal(ks[0], (n_users, E), jnp.float32),
        "movie_emb": jax.random.normal(ks[1], (n_movies, E), jnp.float32),
        "wf": jax.random.normal(ks[2], (F, E), jnp.float32) / jnp.sqrt(F),
        "bf": jax.random.normal(ks[3], (1, E), jnp.float32) * 0.01,
        "w1": jax.random.normal(ks[4], (3 * E, H), jnp.float32) / jnp.sqrt(3 * E),
        "b1": jax.random.normal(ks[5], (1, H), jnp.float32) * 0.01,
        "w2": jax.random.normal(ks[6], (H, 1), jnp.float32) / jnp.sqrt(H),
        "b2": jax.random.normal(ks[7], (1, 1), jnp.float32) * 0.01,
    }


def _reference(user_ids, movie_ids, movie_features, params):
    u = jnp.take(params["user_emb"], user_ids, axis=0)
    m = jnp.take(params["movie_emb"], movie_ids, axis=0)
    f = movie_features @ params["wf"] + params["bf"]
    c = jnp.concatenate([u, m, f], axis=1)
    h = jnp.maximum(c @ params["w1"] + params["b1"], 0.0)
    return (h @ params["w2"] + params["b2"])[:, 0]


if __name__ == "__main__":
    key = jax.random.PRNGKey(0)
    n_users, n_movies = 100, 80
    movie_feature_dim, embedding_dim = 16, 32
    batch = 8

    k_p, k_u, k_m, k_f = jax.random.split(key, 4)
    params = init_params(k_p, n_users, n_movies, movie_feature_dim, embedding_dim)
    fused = prepare_fused_params(params)            # hoisted / cached once

    user_ids = jax.random.randint(k_u, (batch,), 0, n_users)
    movie_ids = jax.random.randint(k_m, (batch,), 0, n_movies)
    movie_features = jax.random.normal(k_f, (batch, movie_feature_dim), jnp.float32)

    fwd = jax.jit(deepncf_forward)
    out = fwd(user_ids, movie_ids, movie_features, fused)
    out = jax.block_until_ready(out)

    ref = _reference(user_ids, movie_ids, movie_features, params)
    assert out.shape == (batch,)
    # bf16 embedding/W1 streaming + folded accumulation order => looser tol
    assert jnp.allclose(out, ref, atol=5e-2, rtol=5e-2), "mismatch vs JAX reference"

    print("KERNEL_OK")
</pallas_src>

<mosaic_0001>
module attributes {stable_mosaic.version = 11 : i64} {
  func.func @deepncf_kernel(%arg0: i32, %arg1: memref<128x32xbf16, #tpu.memory_space<vmem>>, %arg2: memref<128x32xbf16, #tpu.memory_space<vmem>>, %arg3: memref<128x16xf32, #tpu.memory_space<vmem>>, %arg4: memref<32x128xbf16, #tpu.memory_space<vmem>>, %arg5: memref<32x128xbf16, #tpu.memory_space<vmem>>, %arg6: memref<16x128xf32, #tpu.memory_space<vmem>>, %arg7: memref<1x128xf32, #tpu.memory_space<vmem>>, %arg8: memref<1x128xf32, #tpu.memory_space<vmem>>, %arg9: memref<1xf32, #tpu.memory_space<smem>>, %arg10: memref<1x1x128xf32, #tpu.memory_space<vmem>>) attributes {dimension_semantics = [#tpu.dimension_semantics<parallel>], iteration_bounds = array<i64: 1>, scalar_prefetch = 0 : i64, scratch_operands = 0 : i64, tpu.core_type = #tpu.core_type<tc>, window_params = [{transform_indices = @transform_0, window_bounds = array<i64: 128, 32>}, {transform_indices = @transform_1, window_bounds = array<i64: 128, 32>}, {transform_indices = @transform_2, window_bounds = array<i64: 128, 16>}, {pipeline_mode = #tpu.pipeline_mode<synchronous>, transform_indices = @transform_3, window_bounds = array<i64: 32, 128>}, {pipeline_mode = #tpu.pipeline_mode<synchronous>, transform_indices = @transform_4, window_bounds = array<i64: 32, 128>}, {pipeline_mode = #tpu.pipeline_mode<synchronous>, transform_indices = @transform_5, window_bounds = array<i64: 16, 128>}, {pipeline_mode = #tpu.pipeline_mode<synchronous>, transform_indices = @transform_6, window_bounds = array<i64: 1, 128>}, {pipeline_mode = #tpu.pipeline_mode<synchronous>, transform_indices = @transform_7, window_bounds = array<i64: 1, 128>}, {transform_indices = @transform_8, window_bounds = array<i64: 1>}, {transform_indices = @transform_9, window_bounds = array<i64: 1, 1, 128>}]} {
    %c0 = arith.constant 0 : index
    %c0_0 = arith.constant 0 : index
    %0 = vector.load %arg1[%c0, %c0_0] : memref<128x32xbf16, #tpu.memory_space<vmem>>, vector<128x32xbf16>
    %c0_1 = arith.constant 0 : index
    %c0_2 = arith.constant 0 : index
    %1 = vector.load %arg4[%c0_1, %c0_2] : memref<32x128xbf16, #tpu.memory_space<vmem>>, vector<32x128xbf16>
    %cst = arith.constant dense<0.000000e+00> : vector<128x128xf32>
    %2 = tpu.matmul %0, %1, %cst {dimension_numbers = #tpu.dot_dimension_numbers<[1], [0], [0], [1], [0, 0, 1, 1], [], []>} : vector<128x32xbf16>, vector<32x128xbf16>, vector<128x128xf32> -> vector<128x128xf32>
    %c0_3 = arith.constant 0 : index
    %c0_4 = arith.constant 0 : index
    %3 = vector.load %arg2[%c0_3, %c0_4] : memref<128x32xbf16, #tpu.memory_space<vmem>>, vector<128x32xbf16>
    %c0_5 = arith.constant 0 : index
    %c0_6 = arith.constant 0 : index
    %4 = vector.load %arg5[%c0_5, %c0_6] : memref<32x128xbf16, #tpu.memory_space<vmem>>, vector<32x128xbf16>
    %cst_7 = arith.constant dense<0.000000e+00> : vector<128x128xf32>
    %5 = tpu.matmul %3, %4, %cst_7 {dimension_numbers = #tpu.dot_dimension_numbers<[1], [0], [0], [1], [0, 0, 1, 1], [], []>} : vector<128x32xbf16>, vector<32x128xbf16>, vector<128x128xf32> -> vector<128x128xf32>
    %6 = arith.addf %2, %5 : vector<128x128xf32>
    %c0_8 = arith.constant 0 : index
    %c0_9 = arith.constant 0 : index
    %7 = vector.load %arg3[%c0_8, %c0_9] : memref<128x16xf32, #tpu.memory_space<vmem>>, vector<128x16xf32>
    %c0_10 = arith.constant 0 : index
    %c0_11 = arith.constant 0 : index
    %8 = vector.load %arg6[%c0_10, %c0_11] : memref<16x128xf32, #tpu.memory_space<vmem>>, vector<16x128xf32>
    %cst_12 = arith.constant dense<0.000000e+00> : vector<128x128xf32>
    %9 = tpu.matmul %7, %8, %cst_12 {dimension_numbers = #tpu.dot_dimension_numbers<[1], [0], [0], [1], [0, 0, 1, 1], [], []>} : vector<128x16xf32>, vector<16x128xf32>, vector<128x128xf32> -> vector<128x128xf32>
    %10 = arith.addf %6, %9 : vector<128x128xf32>
    %c0_13 = arith.constant 0 : index
    %c0_14 = arith.constant 0 : index
    %11 = vector.load %arg7[%c0_13, %c0_14] : memref<1x128xf32, #tpu.memory_space<vmem>>, vector<1x128xf32>
    %12 = vector.broadcast %11 : vector<1x128xf32> to vector<128x128xf32>
    %13 = arith.addf %10, %12 : vector<128x128xf32>
    %cst_15 = arith.constant 0.000000e+00 : f32
    %14 = vector.broadcast %cst_15 : f32 to vector<128x128xf32>
    %15 = arith.maximumf %13, %14 : vector<128x128xf32>
    %c0_16 = arith.constant 0 : index
    %c0_17 = arith.constant 0 : index
    %16 = vector.load %arg8[%c0_16, %c0_17] : memref<1x128xf32, #tpu.memory_space<vmem>>, vector<1x128xf32>
    %17 = vector.broadcast %16 : vector<1x128xf32> to vector<128x128xf32>
    %18 = arith.mulf %15, %17 : vector<128x128xf32>
    %cst_18 = arith.constant dense<0.000000e+00> : vector<128xf32>
    %19 = vector.multi_reduction <add>, %18, %cst_18 [1] : vector<128x128xf32> to vector<128xf32>
    %c0_19 = arith.constant 0 : index
    %20 = memref.load %arg9[%c0_19] : memref<1xf32, #tpu.memory_space<smem>>
    %21 = vector.broadcast %20 : f32 to vector<128xf32>
    %22 = arith.addf %19, %21 : vector<128xf32>
    %23 = vector.shape_cast %22 : vector<128xf32> to vector<1x1x128xf32>
    %c0_20 = arith.constant 0 : index
    %c0_21 = arith.constant 0 : index
    %c0_22 = arith.constant 0 : index
    %24 = vector.load %arg10[%c0_20, %c0_21, %c0_22] : memref<1x1x128xf32, #tpu.memory_space<vmem>>, vector<1x1x128xf32>
    tpu.vector_store %arg10[%c0_20, %c0_21, %c0_22], %23 {strides = array<i32>} : memref<1x1x128xf32, #tpu.memory_space<vmem>>, vector<1x1x128xf32>,
    return
  }
  func.func @transform_0(%arg0: i32) -> (i32, i32) {
    %c0_i32 = arith.constant 0 : i32
    %c0_i32_0 = arith.constant 0 : i32
    return %arg0, %c0_i32 : i32, i32
  }
  func.func @transform_1(%arg0: i32) -> (i32, i32) {
    %c0_i32 = arith.constant 0 : i32
    %c0_i32_0 = arith.constant 0 : i32
    return %arg0, %c0_i32 : i32, i32
  }
  func.func @transform_2(%arg0: i32) -> (i32, i32) {
    %c0_i32 = arith.constant 0 : i32
    %c0_i32_0 = arith.constant 0 : i32
    return %arg0, %c0_i32 : i32, i32
  }
  func.func @transform_3(%arg0: i32) -> (i32, i32) {
    %c0_i32 = arith.constant 0 : i32
    %c0_i32_0 = arith.constant 0 : i32
    %c0_i32_1 = arith.constant 0 : i32
    return %c0_i32, %c0_i32_0 : i32, i32
  }
  func.func @transform_4(%arg0: i32) -> (i32, i32) {
    %c0_i32 = arith.constant 0 : i32
    %c0_i32_0 = arith.constant 0 : i32
    %c0_i32_1 = arith.constant 0 : i32
    return %c0_i32, %c0_i32_0 : i32, i32
  }
  func.func @transform_5(%arg0: i32) -> (i32, i32) {
    %c0_i32 = arith.constant 0 : i32
    %c0_i32_0 = arith.constant 0 : i32
    %c0_i32_1 = arith.constant 0 : i32
    return %c0_i32, %c0_i32_0 : i32, i32
  }
  func.func @transform_6(%arg0: i32) -> (i32, i32) {
    %c0_i32 = arith.constant 0 : i32
    %c0_i32_0 = arith.constant 0 : i32
    %c0_i32_1 = arith.constant 0 : i32
    return %c0_i32, %c0_i32_0 : i32, i32
  }
  func.func @transform_7(%arg0: i32) -> (i32, i32) {
    %c0_i32 = arith.constant 0 : i32
    %c0_i32_0 = arith.constant 0 : i32
    %c0_i32_1 = arith.constant 0 : i32
    return %c0_i32, %c0_i32_0 : i32, i32
  }
  func.func @transform_8(%arg0: i32) -> i32 {
    %c0_i32 = arith.constant 0 : i32
    %c0_i32_0 = arith.constant 0 : i32
    return %c0_i32 : i32
  }
  func.func @transform_9(%arg0: i32) -> (i32, i32, i32) {
    %c0_i32 = arith.constant 0 : i32
    %c0_i32_0 = arith.constant 0 : i32
    %c0_i32_1 = arith.constant 0 : i32
    return %arg0, %c0_i32, %c0_i32_0 : i32, i32, i32
  }
}

</mosaic_0001>

<llo_original>
// kernel: deepncf_forward.1
$region0: #{deepncf_forward.1}
  #allocation0 [shape = 'u32[]', space=smem, size = 0x4, offset = 0x4, fixed_abs, tag = 'smem constant byte address 0x4 - core index']
  #allocation1 [shape = 'u32[144,128]{1,0:T(1,128)}', space=vmem, size = 0x12000, scoped, tag = 'internal scratch']
  #allocation2 [shape = 'f32[1]{0:T(128)S(6)}', space=smem, size = 0x200, scoped, tag = 'scoped memory for deepncf_forward.1']
  %s0 = inlined_call_operand.vmem [shape: bf16[128,32], index: 0, kind: input, shape index: {}]
  %s1 = inlined_call_operand.vmem [shape: bf16[128,32], index: 1, kind: input, shape index: {}]
  %s2 = inlined_call_operand.vmem [shape: f32[128,16], index: 2, kind: input, shape index: {}]
  %s3 = inlined_call_operand.vmem [shape: bf16[32,128], index: 3, kind: input, shape index: {}]
  %s4 = inlined_call_operand.vmem [shape: bf16[32,128], index: 4, kind: input, shape index: {}]
  %s5 = inlined_call_operand.vmem [shape: f32[16,128], index: 5, kind: input, shape index: {}]
  %s6 = inlined_call_operand.vmem [shape: f32[1,128], index: 6, kind: input, shape index: {}]
  %s7 = inlined_call_operand.vmem [shape: f32[1,128], index: 7, kind: input, shape index: {}]
  %s8 = inlined_call_operand.<no memory space> [shape: f32[1], index: 8, kind: input, shape index: {}]
  %s9 = inlined_call_operand.vmem [shape: f32[1,1,128], index: 9, kind: output, shape index: {}]
  %s10 = sld [smem:[#allocation0]]
  $region46: #{deepncf_forward.1} parent=0
    _
  %s12 = ssub.s32 1, %s10
  %s13 = scalar_select 0, %s12, %s10
  %14 = sst [smem:[#allocation2]] %s8
  // Predicated region
  $region2: #{deepncf_forward.1} parent=0 // pred_check
    _
  $region3: #{deepncf_forward.1} parent=0 // pred_check_branch
    %16 = sbr.rel (0) target = $region5
  $region4: #{deepncf_forward.1} parent=0 // pred_region
    _
  $region5: #{deepncf_forward.1} parent=0 // pred_fallthru
    _
  // Predicated region
  $region6: #{deepncf_forward.1} parent=0 // pred_check
    _
  $region7: #{deepncf_forward.1} parent=0 // pred_check_branch
    %18 = sbr.rel (0) target = $region9
  $region8: #{deepncf_forward.1} parent=0 // pred_region
    _
  $region9: #{deepncf_forward.1} parent=0 // pred_fallthru
    _
  // Predicated region
  $region10: #{deepncf_forward.1} parent=0 // pred_check
    _
  $region11: #{deepncf_forward.1} parent=0 // pred_check_branch
    %20 = sbr.rel (0) target = $region13
  $region12: #{deepncf_forward.1} parent=0 // pred_region
    _
  $region13: #{deepncf_forward.1} parent=0 // pred_fallthru
    _
  // Predicated region
  $region14: #{deepncf_forward.1} parent=0 // pred_check
    _
  $region15: #{deepncf_forward.1} parent=0 // pred_check_branch
    %22 = sbr.rel (0) target = $region17
  $region16: #{deepncf_forward.1} parent=0 // pred_region
    _
  $region17: #{deepncf_forward.1} parent=0 // pred_fallthru
    _
  // Predicated region
  $region18: #{deepncf_forward.1} parent=0 // pred_check
    _
  $region19: #{deepncf_forward.1} parent=0 // pred_check_branch
    %24 = sbr.rel (0) target = $region21
  $region20: #{deepncf_forward.1} parent=0 // pred_region
    _
  $region21: #{deepncf_forward.1} parent=0 // pred_fallthru
    _
  // Predicated region
  $region22: #{deepncf_forward.1} parent=0 // pred_check
    _
  $region23: #{deepncf_forward.1} parent=0 // pred_check_branch
    %26 = sbr.rel (0) target = $region25
  $region24: #{deepncf_forward.1} parent=0 // pred_region
    _
  $region25: #{deepncf_forward.1} parent=0 // pred_fallthru
    _
  // Predicated region
  $region26: #{deepncf_forward.1} parent=0 // pred_check
    _
  $region27: #{deepncf_forward.1} parent=0 // pred_check_branch
    %28 = sbr.rel (0) target = $region29
  $region28: #{deepncf_forward.1} parent=0 // pred_region
    _
  $region29: #{deepncf_forward.1} parent=0 // pred_fallthru
    _
  // Predicated region
  $region30: #{deepncf_forward.1} parent=0 // pred_check
    _
  $region31: #{deepncf_forward.1} parent=0 // pred_check_branch
    %30 = sbr.rel (0) target = $region33
  $region32: #{deepncf_forward.1} parent=0 // pred_region
    _
  $region33: #{deepncf_forward.1} parent=0 // pred_fallthru
    _
  // Predicated region
  $region34: #{deepncf_forward.1} parent=0 // pred_check
    _
  $region35: #{deepncf_forward.1} parent=0 // pred_check_branch
    %32 = sbr.rel (0) target = $region37
  $region36: #{deepncf_forward.1} parent=0 // pred_region
    _
  $region37: #{deepncf_forward.1} parent=0 // pred_fallthru
    _
  %v34 = vld [vmem:[%s0] sm:$0xf]
  %v35 = vld [vmem:[%s0 + $0x4] sm:$0xf]
  %v36 = vld [vmem:[%s0 + $0x8] sm:$0xf]
  %v37 = vld [vmem:[%s0 + $0xc] sm:$0xf]
  %v38 = vld [vmem:[%s0 + $0x10] sm:$0xf]
  %v39 = vld [vmem:[%s0 + $0x14] sm:$0xf]
  %v40 = vld [vmem:[%s0 + $0x18] sm:$0xf]
  %v41 = vld [vmem:[%s0 + $0x1c] sm:$0xf]
  %v42 = vld [vmem:[%s0 + $0x20] sm:$0xf]
  %v43 = vld [vmem:[%s0 + $0x24] sm:$0xf]
  %v44 = vld [vmem:[%s0 + $0x28] sm:$0xf]
  %v45 = vld [vmem:[%s0 + $0x2c] sm:$0xf]
  %v46 = vld [vmem:[%s0 + $0x30] sm:$0xf]
  %v47 = vld [vmem:[%s0 + $0x34] sm:$0xf]
  %v48 = vld [vmem:[%s0 + $0x38] sm:$0xf]
  %v49 = vld [vmem:[%s0 + $0x3c] sm:$0xf]
  %v50 = vld [vmem:[%s3] sm:$0xf]
  %v51 = vld [vmem:[%s3 + $0x4] sm:$0xf]
  %v52 = vld [vmem:[%s3 + $0x8] sm:$0xf]
  %v53 = vld [vmem:[%s3 + $0xc] sm:$0xf]
  %v54 = vld [vmem:[%s1] sm:$0xf]
  %v55 = vld [vmem:[%s1 + $0x4] sm:$0xf]
  %v56 = vld [vmem:[%s1 + $0x8] sm:$0xf]
  %v57 = vld [vmem:[%s1 + $0xc] sm:$0xf]
  %v58 = vld [vmem:[%s1 + $0x10] sm:$0xf]
  %v59 = vld [vmem:[%s1 + $0x14] sm:$0xf]
  %v60 = vld [vmem:[%s1 + $0x18] sm:$0xf]
  %v61 = vld [vmem:[%s1 + $0x1c] sm:$0xf]
  %v62 = vld [vmem:[%s1 + $0x20] sm:$0xf]
  %v63 = vld [vmem:[%s1 + $0x24] sm:$0xf]
  %v64 = vld [vmem:[%s1 + $0x28] sm:$0xf]
  %v65 = vld [vmem:[%s1 + $0x2c] sm:$0xf]
  %v66 = vld [vmem:[%s1 + $0x30] sm:$0xf]
  %v67 = vld [vmem:[%s1 + $0x34] sm:$0xf]
  %v68 = vld [vmem:[%s1 + $0x38] sm:$0xf]
  %v69 = vld [vmem:[%s1 + $0x3c] sm:$0xf]
  %v70 = vld [vmem:[%s4] sm:$0xf]
  %v71 = vld [vmem:[%s4 + $0x4] sm:$0xf]
  %v72 = vld [vmem:[%s4 + $0x8] sm:$0xf]
  %v73 = vld [vmem:[%s4 + $0xc] sm:$0xf]
  %v90 = vunpack.c.l.b16 %v54
  %v91 = vunpack.c.l.b16 %v55
  %v92 = vunpack.c.l.b16 %v56
  %v93 = vunpack.c.l.b16 %v57
  %v94 = vunpack.c.l.b16 %v58
  %v95 = vunpack.c.l.b16 %v59
  %v96 = vunpack.c.l.b16 %v60
  %v97 = vunpack.c.l.b16 %v61
  %v98 = vunpack.c.l.b16 %v62
  %v99 = vunpack.c.l.b16 %v63
  %v100 = vunpack.c.l.b16 %v64
  %v101 = vunpack.c.l.b16 %v65
  %v102 = vunpack.c.l.b16 %v66
  %v103 = vunpack.c.l.b16 %v67
  %v104 = vunpack.c.l.b16 %v68
  %v105 = vunpack.c.l.b16 %v69
  %v106 = vpack.c.b16 %v91, %v90
  %v107 = vpack.c.b16 %v93, %v92
  %v108 = vpack.c.b16 %v95, %v94
  %v109 = vpack.c.b16 %v97, %v96
  %v110 = vpack.c.b16 %v99, %v98
  %v111 = vpack.c.b16 %v101, %v100
  %v112 = vpack.c.b16 %v103, %v102
  %v113 = vpack.c.b16 %v105, %v104
  %v118 = vunpack.c.l.b16 %v70
  %v119 = vunpack.c.l.b16 %v71
  %v120 = vunpack.c.l.b16 %v72
  %v121 = vunpack.c.l.b16 %v73
  %v122 = vpack.c.b16 %v119, %v118
  %v123 = vpack.c.b16 %v121, %v120
  %vm126 = vcmask 261120
  %v128 = vsel %vm126, %v106, 0
  %v131 = vsel %vm126, %v107, 0
  %v134 = vsel %vm126, %v108, 0
  %v137 = vsel %vm126, %v109, 0
  %v140 = vsel %vm126, %v110, 0
  %v143 = vsel %vm126, %v111, 0
  %v146 = vsel %vm126, %v112, 0
  %v149 = vsel %vm126, %v113, 0
  %151 = vmatprep.subr.bf16.mxu0 0
  %152 = vmatpush1.bf16.msra.mxu0 0
  %153 = vmatprep.subr.bf16.mxu0 0
  %154 = vmatpush1.bf16.msra.mxu0 0
  %155 = vmatprep.subr.bf16.mxu0 0
  %156 = vmatpush1.bf16.msra.mxu0 0
  %157 = vmatprep.subr.bf16.mxu0 0
  %158 = vmatpush1.bf16.msra.mxu0 0
  %159 = vmatprep.subr.bf16.mxu0 0
  %160 = vmatpush1.bf16.msra.mxu0 0
  %161 = vmatprep.subr.bf16.mxu0 0
  %162 = vmatpush1.bf16.msra.mxu0 0
  %163 = vmatprep.subr.bf16.mxu0 0
  %164 = vmatpush1.bf16.msra.mxu0 %v123
  %165 = vmatprep.subr.bf16.mxu0 0
  %166 = vmatpush1.bf16.msra.mxu0 %v122
  %167 = vmatprep.subr.bf16.mxu0 0
  %168 = vmatpush2.bf16.msra.mxu0 0
  %169 = vmatprep.subr.bf16.mxu0 0
  %170 = vmatpush2.bf16.msra.mxu0 0
  %171 = vmatprep.subr.bf16.mxu0 0
  %172 = vmatpush2.bf16.msra.mxu0 0
  %173 = vmatprep.subr.bf16.mxu0 0
  %174 = vmatpush2.bf16.msra.mxu0 0
  %175 = vmatprep.subr.bf16.mxu0 0
  %176 = vmatpush2.bf16.msra.mxu0 0
  %177 = vmatprep.subr.bf16.mxu0 0
  %178 = vmatpush2.bf16.msra.mxu0 0
  %179 = vmatprep.subr.bf16.mxu0 0
  %180 = vmatpush2.bf16.msra.mxu0 0
  %181 = vmatprep.subr.bf16.mxu0 0
  %182 = vmatpush2.bf16.msra.mxu0 0
  %183 = vmatprep.mubr.bf16.mxu0 0
  %184 = vmatmul.mubr.bf16.gmra.mxu0 %v128
  %v185 = vpop.f32.mrf.mxu0
  %v186 = vadd.f32 0.0, %v185
  %v187 = vpop.f32.mrf.mxu0
  %v188 = vpop.f32.mrf.mxu0
  %v189 = vadd.f32 0.0, %v188
  %v190 = vpop.f32.mrf.mxu0
  %191 = vmatprep.mubr.bf16.mxu0 0
  %192 = vmatmul.mubr.bf16.gmra.mxu0 %v131
  %v193 = vpop.f32.mrf.mxu0
  %v194 = vadd.f32 0.0, %v193
  %v195 = vpop.f32.mrf.mxu0
  %v196 = vpop.f32.mrf.mxu0
  %v197 = vadd.f32 0.0, %v196
  %v198 = vpop.f32.mrf.mxu0
  %199 = vmatprep.mubr.bf16.mxu0 0
  %200 = vmatmul.mubr.bf16.gmra.mxu0 %v134
  %v201 = vpop.f32.mrf.mxu0
  %v202 = vadd.f32 0.0, %v201
  %v203 = vpop.f32.mrf.mxu0
  %v204 = vpop.f32.mrf.mxu0
  %v205 = vadd.f32 0.0, %v204
  %v206 = vpop.f32.mrf.mxu0
  %207 = vmatprep.mubr.bf16.mxu0 0
  %208 = vmatmul.mubr.bf16.gmra.mxu0 %v137
  %v209 = vpop.f32.mrf.mxu0
  %v210 = vadd.f32 0.0, %v209
  %v211 = vpop.f32.mrf.mxu0
  %v212 = vpop.f32.mrf.mxu0
  %v213 = vadd.f32 0.0, %v212
  %v214 = vpop.f32.mrf.mxu0
  %215 = vmatprep.mubr.bf16.mxu0 0
  %216 = vmatmul.mubr.bf16.gmra.mxu0 %v140
  %v217 = vpop.f32.mrf.mxu0
  %v218 = vadd.f32 0.0, %v217
  %v219 = vpop.f32.mrf.mxu0
  %v220 = vpop.f32.mrf.mxu0
  %v221 = vadd.f32 0.0, %v220
  %v222 = vpop.f32.mrf.mxu0
  %223 = vmatprep.mubr.bf16.mxu0 0
  %224 = vmatmul.mubr.bf16.gmra.mxu0 %v143
  %v225 = vpop.f32.mrf.mxu0
  %v226 = vadd.f32 0.0, %v225
  %v227 = vpop.f32.mrf.mxu0
  %v228 = vpop.f32.mrf.mxu0
  %v229 = vadd.f32 0.0, %v228
  %v230 = vpop.f32.mrf.mxu0
  %231 = vmatprep.mubr.bf16.mxu0 0
  %232 = vmatmul.mubr.bf16.gmra.mxu0 %v146
  %v233 = vpop.f32.mrf.mxu0
  %v234 = vadd.f32 0.0, %v233
  %v235 = vpop.f32.mrf.mxu0
  %v236 = vpop.f32.mrf.mxu0
  %v237 = vadd.f32 0.0, %v236
  %v238 = vpop.f32.mrf.mxu0
  %239 = vmatprep.mubr.bf16.mxu0 0
  %240 = vmatmul.mubr.bf16.gmra.mxu0 %v149
  %v241 = vpop.f32.mrf.mxu0
  %v242 = vadd.f32 0.0, %v241
  %v243 = vpop.f32.mrf.mxu0
  %v244 = vpop.f32.mrf.mxu0
  %v245 = vadd.f32 0.0, %v244
  %v246 = vpop.f32.mrf.mxu0
  %247 = vdwg.mxu0
  %v264 = vunpack.c.l.b16 %v34
  %v265 = vunpack.c.l.b16 %v35
  %v266 = vunpack.c.l.b16 %v36
  %v267 = vunpack.c.l.b16 %v37
  %v268 = vunpack.c.l.b16 %v38
  %v269 = vunpack.c.l.b16 %v39
  %v270 = vunpack.c.l.b16 %v40
  %v271 = vunpack.c.l.b16 %v41
  %v272 = vunpack.c.l.b16 %v42
  %v273 = vunpack.c.l.b16 %v43
  %v274 = vunpack.c.l.b16 %v44
  %v275 = vunpack.c.l.b16 %v45
  %v276 = vunpack.c.l.b16 %v46
  %v277 = vunpack.c.l.b16 %v47
  %v278 = vunpack.c.l.b16 %v48
  %v279 = vunpack.c.l.b16 %v49
  %v280 = vpack.c.b16 %v265, %v264
  %v281 = vpack.c.b16 %v267, %v266
  %v282 = vpack.c.b16 %v269, %v268
  %v283 = vpack.c.b16 %v271, %v270
  %v284 = vpack.c.b16 %v273, %v272
  %v285 = vpack.c.b16 %v275, %v274
  %v286 = vpack.c.b16 %v277, %v276
  %v287 = vpack.c.b16 %v279, %v278
  %v292 = vunpack.c.l.b16 %v50
  %v293 = vunpack.c.l.b16 %v51
  %v294 = vunpack.c.l.b16 %v52
  %v295 = vunpack.c.l.b16 %v53
  %v296 = vpack.c.b16 %v293, %v292
  %v297 = vpack.c.b16 %v295, %v294
  %v301 = vsel %vm126, %v280, 0
  %v304 = vsel %vm126, %v281, 0
  %v307 = vsel %vm126, %v282, 0
  %v310 = vsel %vm126, %v283, 0
  %v313 = vsel %vm126, %v284, 0
  %v316 = vsel %vm126, %v285, 0
  %v319 = vsel %vm126, %v286, 0
  %v322 = vsel %vm126, %v287, 0
  %324 = vmatprep.subr.bf16.mxu0 0
  %325 = vmatpush1.bf16.msra.mxu0 0
  %326 = vmatprep.subr.bf16.mxu0 0
  %327 = vmatpush1.bf16.msra.mxu0 0
  %328 = vmatprep.subr.bf16.mxu0 0
  %329 = vmatpush1.bf16.msra.mxu0 0
  %330 = vmatprep.subr.bf16.mxu0 0
  %331 = vmatpush1.bf16.msra.mxu0 0
  %332 = vmatprep.subr.bf16.mxu0 0
  %333 = vmatpush1.bf16.msra.mxu0 0
  %334 = vmatprep.subr.bf16.mxu0 0
  %335 = vmatpush1.bf16.msra.mxu0 0
  %336 = vmatprep.subr.bf16.mxu0 0
  %337 = vmatpush1.bf16.msra.mxu0 %v297
  %338 = vmatprep.subr.bf16.mxu0 0
  %339 = vmatpush1.bf16.msra.mxu0 %v296
  %340 = vmatprep.subr.bf16.mxu0 0
  %341 = vmatpush2.bf16.msra.mxu0 0
  %342 = vmatprep.subr.bf16.mxu0 0
  %343 = vmatpush2.bf16.msra.mxu0 0
  %344 = vmatprep.subr.bf16.mxu0 0
  %345 = vmatpush2.bf16.msra.mxu0 0
  %346 = vmatprep.subr.bf16.mxu0 0
  %347 = vmatpush2.bf16.msra.mxu0 0
  %348 = vmatprep.subr.bf16.mxu0 0
  %349 = vmatpush2.bf16.msra.mxu0 0
  %350 = vmatprep.subr.bf16.mxu0 0
  %351 = vmatpush2.bf16.msra.mxu0 0
  %352 = vmatprep.subr.bf16.mxu0 0
  %353 = vmatpush2.bf16.msra.mxu0 0
  %354 = vmatprep.subr.bf16.mxu0 0
  %355 = vmatpush2.bf16.msra.mxu0 0
  %356 = vmatprep.mubr.bf16.mxu0 0
  %357 = vmatmul.mubr.bf16.gmra.mxu0 %v301
  %v358 = vpop.f32.mrf.mxu0
  %v359 = vadd.f32 %v186, %v358
  %v360 = vpop.f32.mrf.mxu0
  %v361 = vpop.f32.mrf.mxu0
  %v362 = vadd.f32 %v189, %v361
  %v363 = vpop.f32.mrf.mxu0
  %364 = vmatprep.mubr.bf16.mxu0 0
  %365 = vmatmul.mubr.bf16.gmra.mxu0 %v304
  %v366 = vpop.f32.mrf.mxu0
  %v367 = vadd.f32 %v194, %v366
  %v368 = vpop.f32.mrf.mxu0
  %v369 = vpop.f32.mrf.mxu0
  %v370 = vadd.f32 %v197, %v369
  %v371 = vpop.f32.mrf.mxu0
  %372 = vmatprep.mubr.bf16.mxu0 0
  %373 = vmatmul.mubr.bf16.gmra.mxu0 %v307
  %v374 = vpop.f32.mrf.mxu0
  %v375 = vadd.f32 %v202, %v374
  %v376 = vpop.f32.mrf.mxu0
  %v377 = vpop.f32.mrf.mxu0
  %v378 = vadd.f32 %v205, %v377
  %v379 = vpop.f32.mrf.mxu0
  %380 = vmatprep.mubr.bf16.mxu0 0
  %381 = vmatmul.mubr.bf16.gmra.mxu0 %v310
  %v382 = vpop.f32.mrf.mxu0
  %v383 = vadd.f32 %v210, %v382
  %v384 = vpop.f32.mrf.mxu0
  %v385 = vpop.f32.mrf.mxu0
  %v386 = vadd.f32 %v213, %v385
  %v387 = vpop.f32.mrf.mxu0
  %388 = vmatprep.mubr.bf16.mxu0 0
  %389 = vmatmul.mubr.bf16.gmra.mxu0 %v313
  %v390 = vpop.f32.mrf.mxu0
  %v391 = vadd.f32 %v218, %v390
  %v392 = vpop.f32.mrf.mxu0
  %v393 = vpop.f32.mrf.mxu0
  %v394 = vadd.f32 %v221, %v393
  %v395 = vpop.f32.mrf.mxu0
  %396 = vmatprep.mubr.bf16.mxu0 0
  %397 = vmatmul.mubr.bf16.gmra.mxu0 %v316
  %v398 = vpop.f32.mrf.mxu0
  %v399 = vadd.f32 %v226, %v398
  %v400 = vpop.f32.mrf.mxu0
  %v401 = vpop.f32.mrf.mxu0
  %v402 = vadd.f32 %v229, %v401
  %v403 = vpop.f32.mrf.mxu0
  %404 = vmatprep.mubr.bf16.mxu0 0
  %405 = vmatmul.mubr.bf16.gmra.mxu0 %v319
  %v406 = vpop.f32.mrf.mxu0
  %v407 = vadd.f32 %v234, %v406
  %v408 = vpop.f32.mrf.mxu0
  %v409 = vpop.f32.mrf.mxu0
  %v410 = vadd.f32 %v237, %v409
  %v411 = vpop.f32.mrf.mxu0
  %412 = vmatprep.mubr.bf16.mxu0 0
  %413 = vmatmul.mubr.bf16.gmra.mxu0 %v322
  %v414 = vpop.f32.mrf.mxu0
  %v415 = vadd.f32 %v242, %v414
  %v416 = vpop.f32.mrf.mxu0
  %v417 = vpop.f32.mrf.mxu0
  %v418 = vadd.f32 %v245, %v417
  %v419 = vpop.f32.mrf.mxu0
  %420 = vdwg.mxu0
  %v421 = vld [vmem:[%s2] sm:$0xff]
  %v422 = vld [vmem:[%s2 + $0x8] sm:$0xff]
  %v423 = vld [vmem:[%s2 + $0x10] sm:$0xff]
  %v424 = vld [vmem:[%s2 + $0x18] sm:$0xff]
  %v425 = vld [vmem:[%s2 + $0x20] sm:$0xff]
  %v426 = vld [vmem:[%s2 + $0x28] sm:$0xff]
  %v427 = vld [vmem:[%s2 + $0x30] sm:$0xff]
  %v428 = vld [vmem:[%s2 + $0x38] sm:$0xff]
  %v429 = vld [vmem:[%s2 + $0x40] sm:$0xff]
  %v430 = vld [vmem:[%s2 + $0x48] sm:$0xff]
  %v431 = vld [vmem:[%s2 + $0x50] sm:$0xff]
  %v432 = vld [vmem:[%s2 + $0x58] sm:$0xff]
  %v433 = vld [vmem:[%s2 + $0x60] sm:$0xff]
  %v434 = vld [vmem:[%s2 + $0x68] sm:$0xff]
  %v435 = vld [vmem:[%s2 + $0x70] sm:$0xff]
  %v436 = vld [vmem:[%s2 + $0x78] sm:$0xff]
  %v437 = vld [vmem:[%s5] sm:$0xff]
  %v438 = vld [vmem:[%s5 + $0x8] sm:$0xff]
  %vm439 = vcmask 130048
  %v441 = vsel %vm439, %v421, 0
  %v444 = vsel %vm439, %v422, 0
  %v447 = vsel %vm439, %v423, 0
  %v450 = vsel %vm439, %v424, 0
  %v453 = vsel %vm439, %v425, 0
  %v456 = vsel %vm439, %v426, 0
  %v459 = vsel %vm439, %v427, 0
  %v462 = vsel %vm439, %v428, 0
  %v465 = vsel %vm439, %v429, 0
  %v468 = vsel %vm439, %v430, 0
  %v471 = vsel %vm439, %v431, 0
  %v474 = vsel %vm439, %v432, 0
  %v477 = vsel %vm439, %v433, 0
  %v480 = vsel %vm439, %v434, 0
  %v483 = vsel %vm439, %v435, 0
  %v486 = vsel %vm439, %v436, 0
  %488 = vmatprep.subr.mxu0 0.0
  %489 = vmatpush1.msra.mxu0 0.0
  %490 = vmatprep.subr.mxu0 0.0
  %491 = vmatpush1.msra.mxu0 0.0
  %492 = vmatprep.subr.mxu0 0.0
  %493 = vmatpush1.msra.mxu0 0.0
  %494 = vmatprep.subr.mxu0 0.0
  %495 = vmatpush1.msra.mxu0 0.0
  %496 = vmatprep.subr.mxu0 0.0
  %497 = vmatpush1.msra.mxu0 0.0
  %498 = vmatprep.subr.mxu0 0.0
  %499 = vmatpush1.msra.mxu0 0.0
  %500 = vmatprep.subr.mxu0 0.0
  %501 = vmatpush1.msra.mxu0 0.0
  %502 = vmatprep.subr.mxu0 0.0
  %503 = vmatpush1.msra.mxu0 0.0
  %504 = vmatprep.subr.mxu0 0.0
  %505 = vmatpush1.msra.mxu0 0.0
  %506 = vmatprep.subr.mxu0 0.0
  %507 = vmatpush1.msra.mxu0 0.0
  %508 = vmatprep.subr.mxu0 0.0
  %509 = vmatpush1.msra.mxu0 0.0
  %510 = vmatprep.subr.mxu0 0.0
  %511 = vmatpush1.msra.mxu0 0.0
  %512 = vmatprep.subr.mxu0 0.0
  %513 = vmatpush1.msra.mxu0 0.0
  %514 = vmatprep.subr.mxu0 0.0
  %515 = vmatpush1.msra.mxu0 0.0
  %516 = vmatprep.subr.mxu0 0.0
  %517 = vmatpush1.msra.mxu0 %v438
  %518 = vmatprep.subr.mxu0 0.0
  %519 = vmatpush1.msra.mxu0 %v437
  %520 = vmatprep.subr.mxu0 0.0
  %521 = vmatpush2.msra.mxu0 0.0
  %522 = vmatprep.subr.mxu0 0.0
  %523 = vmatpush2.msra.mxu0 0.0
  %524 = vmatprep.subr.mxu0 0.0
  %525 = vmatpush2.msra.mxu0 0.0
  %526 = vmatprep.subr.mxu0 0.0
  %527 = vmatpush2.msra.mxu0 0.0
  %528 = vmatprep.subr.mxu0 0.0
  %529 = vmatpush2.msra.mxu0 0.0
  %530 = vmatprep.subr.mxu0 0.0
  %531 = vmatpush2.msra.mxu0 0.0
  %532 = vmatprep.subr.mxu0 0.0
  %533 = vmatpush2.msra.mxu0 0.0
  %534 = vmatprep.subr.mxu0 0.0
  %535 = vmatpush2.msra.mxu0 0.0
  %536 = vmatprep.subr.mxu0 0.0
  %537 = vmatpush2.msra.mxu0 0.0
  %538 = vmatprep.subr.mxu0 0.0
  %539 = vmatpush2.msra.mxu0 0.0
  %540 = vmatprep.subr.mxu0 0.0
  %541 = vmatpush2.msra.mxu0 0.0
  %542 = vmatprep.subr.mxu0 0.0
  %543 = vmatpush2.msra.mxu0 0.0
  %544 = vmatprep.subr.mxu0 0.0
  %545 = vmatpush2.msra.mxu0 0.0
  %546 = vmatprep.subr.mxu0 0.0
  %547 = vmatpush2.msra.mxu0 0.0
  %548 = vmatprep.subr.mxu0 0.0
  %549 = vmatpush2.msra.mxu0 0.0
  %550 = vmatprep.subr.mxu0 0.0
  %551 = vmatpush2.msra.mxu0 0.0
  %552 = vmatprep.mubr.f32.mxu0 0.0
  %553 = vmatmul.mubr.f32.gmra.mxu0 %v441
  %v554 = vpop.f32.mrf.mxu0
  %v555 = vadd.f32 0.0, %v554
  %v556 = vpop.f32.mrf.mxu0
  %557 = vmatprep.mubr.f32.mxu0 0.0
  %558 = vmatmul.mubr.f32.gmra.mxu0 %v444
  %v559 = vpop.f32.mrf.mxu0
  %v560 = vadd.f32 0.0, %v559
  %v561 = vpop.f32.mrf.mxu0
  %562 = vmatprep.mubr.f32.mxu0 0.0
  %563 = vmatmul.mubr.f32.gmra.mxu0 %v447
  %v564 = vpop.f32.mrf.mxu0
  %v565 = vadd.f32 0.0, %v564
  %v566 = vpop.f32.mrf.mxu0
  %567 = vmatprep.mubr.f32.mxu0 0.0
  %568 = vmatmul.mubr.f32.gmra.mxu0 %v450
  %v569 = vpop.f32.mrf.mxu0
  %v570 = vadd.f32 0.0, %v569
  %v571 = vpop.f32.mrf.mxu0
  %572 = vmatprep.mubr.f32.mxu0 0.0
  %573 = vmatmul.mubr.f32.gmra.mxu0 %v453
  %v574 = vpop.f32.mrf.mxu0
  %v575 = vadd.f32 0.0, %v574
  %v576 = vpop.f32.mrf.mxu0
  %577 = vmatprep.mubr.f32.mxu0 0.0
  %578 = vmatmul.mubr.f32.gmra.mxu0 %v456
  %v579 = vpop.f32.mrf.mxu0
  %v580 = vadd.f32 0.0, %v579
  %v581 = vpop.f32.mrf.mxu0
  %582 = vmatprep.mubr.f32.mxu0 0.0
  %583 = vmatmul.mubr.f32.gmra.mxu0 %v459
  %v584 = vpop.f32.mrf.mxu0
  %v585 = vadd.f32 0.0, %v584
  %v586 = vpop.f32.mrf.mxu0
  %587 = vmatprep.mubr.f32.mxu0 0.0
  %588 = vmatmul.mubr.f32.gmra.mxu0 %v462
  %v589 = vpop.f32.mrf.mxu0
  %v590 = vadd.f32 0.0, %v589
  %v591 = vpop.f32.mrf.mxu0
  %592 = vmatprep.mubr.f32.mxu0 0.0
  %593 = vmatmul.mubr.f32.gmra.mxu0 %v465
  %v594 = vpop.f32.mrf.mxu0
  %v595 = vadd.f32 0.0, %v594
  %v596 = vpop.f32.mrf.mxu0
  %597 = vmatprep.mubr.f32.mxu0 0.0
  %598 = vmatmul.mubr.f32.gmra.mxu0 %v468
  %v599 = vpop.f32.mrf.mxu0
  %v600 = vadd.f32 0.0, %v599
  %v601 = vpop.f32.mrf.mxu0
  %602 = vmatprep.mubr.f32.mxu0 0.0
  %603 = vmatmul.mubr.f32.gmra.mxu0 %v471
  %v604 = vpop.f32.mrf.mxu0
  %v605 = vadd.f32 0.0, %v604
  %v606 = vpop.f32.mrf.mxu0
  %607 = vmatprep.mubr.f32.mxu0 0.0
  %608 = vmatmul.mubr.f32.gmra.mxu0 %v474
  %v609 = vpop.f32.mrf.mxu0
  %v610 = vadd.f32 0.0, %v609
  %v611 = vpop.f32.mrf.mxu0
  %612 = vmatprep.mubr.f32.mxu0 0.0
  %613 = vmatmul.mubr.f32.gmra.mxu0 %v477
  %v614 = vpop.f32.mrf.mxu0
  %v615 = vadd.f32 0.0, %v614
  %v616 = vpop.f32.mrf.mxu0
  %617 = vmatprep.mubr.f32.mxu0 0.0
  %618 = vmatmul.mubr.f32.gmra.mxu0 %v480
  %v619 = vpop.f32.mrf.mxu0
  %v620 = vadd.f32 0.0, %v619
  %v621 = vpop.f32.mrf.mxu0
  %622 = vmatprep.mubr.f32.mxu0 0.0
  %623 = vmatmul.mubr.f32.gmra.mxu0 %v483
  %v624 = vpop.f32.mrf.mxu0
  %v625 = vadd.f32 0.0, %v624
  %v626 = vpop.f32.mrf.mxu0
  %627 = vmatprep.mubr.f32.mxu0 0.0
  %628 = vmatmul.mubr.f32.gmra.mxu0 %v486
  %v629 = vpop.f32.mrf.mxu0
  %v630 = vadd.f32 0.0, %v629
  %v631 = vpop.f32.mrf.mxu0
  %632 = vdwg.mxu0
  %v633 = vadd.f32 %v359, %v555
  %v634 = vadd.f32 %v362, %v560
  %v635 = vadd.f32 %v367, %v565
  %v636 = vadd.f32 %v370, %v570
  %v637 = vadd.f32 %v375, %v575
  %v638 = vadd.f32 %v378, %v580
  %v639 = vadd.f32 %v383, %v585
  %v640 = vadd.f32 %v386, %v590
  %v641 = vadd.f32 %v391, %v595
  %v642 = vadd.f32 %v394, %v600
  %v643 = vadd.f32 %v399, %v605
  %v644 = vadd.f32 %v402, %v610
  %v645 = vadd.f32 %v407, %v615
  %v646 = vadd.f32 %v410, %v620
  %v647 = vadd.f32 %v415, %v625
  %v648 = vadd.f32 %v418, %v630
  %v649 = vld [vmem:[%s6] sm:$0x1]
  %v651 = vlaneseq
  %v652 = vshrl.u32 %v651, 7
  %v653 = vsub.s32 0, %v652
  %v654 = vrot.slane %v649, %v653
  %v656 = vadd.f32 %v633, %v654
  %v657 = vadd.f32 %v634, %v654
  %v658 = vadd.f32 %v635, %v654
  %v659 = vadd.f32 %v636, %v654
  %v660 = vadd.f32 %v637, %v654
  %v661 = vadd.f32 %v638, %v654
  %v662 = vadd.f32 %v639, %v654
  %v663 = vadd.f32 %v640, %v654
  %v664 = vadd.f32 %v641, %v654
  %v665 = vadd.f32 %v642, %v654
  %v666 = vadd.f32 %v643, %v654
  %v667 = vadd.f32 %v644, %v654
  %v668 = vadd.f32 %v645, %v654
  %v669 = vadd.f32 %v646, %v654
  %v670 = vadd.f32 %v647, %v654
  %v671 = vadd.f32 %v648, %v654
  %v672 = vmax.f32 %v656, 0.0
  %v673 = vmax.f32 %v657, 0.0
  %v674 = vmax.f32 %v658, 0.0
  %v675 = vmax.f32 %v659, 0.0
  %v676 = vmax.f32 %v660, 0.0
  %v677 = vmax.f32 %v661, 0.0
  %v678 = vmax.f32 %v662, 0.0
  %v679 = vmax.f32 %v663, 0.0
  %v680 = vmax.f32 %v664, 0.0
  %v681 = vmax.f32 %v665, 0.0
  %v682 = vmax.f32 %v666, 0.0
  %v683 = vmax.f32 %v667, 0.0
  %v684 = vmax.f32 %v668, 0.0
  %v685 = vmax.f32 %v669, 0.0
  %v686 = vmax.f32 %v670, 0.0
  %v687 = vmax.f32 %v671, 0.0
  %v688 = vld [vmem:[%s7] sm:$0x1]
  %v690 = vlaneseq
  %v691 = vshrl.u32 %v690, 7
  %v692 = vsub.s32 0, %v691
  %v693 = vrot.slane %v688, %v692
  %v695 = vmul.f32 %v672, %v693
  %v696 = vmul.f32 %v673, %v693
  %v697 = vmul.f32 %v674, %v693
  %v698 = vmul.f32 %v675, %v693
  %v699 = vmul.f32 %v676, %v693
  %v700 = vmul.f32 %v677, %v693
  %v701 = vmul.f32 %v678, %v693
  %v702 = vmul.f32 %v679, %v693
  %v703 = vmul.f32 %v680, %v693
  %v704 = vmul.f32 %v681, %v693
  %v705 = vmul.f32 %v682, %v693
  %v706 = vmul.f32 %v683, %v693
  %v707 = vmul.f32 %v684, %v693
  %v708 = vmul.f32 %v685, %v693
  %v709 = vmul.f32 %v686, %v693
  %v710 = vmul.f32 %v687, %v693
  %711 = vadd.xlane.f32.xlu0 %v695
  %v712 = vpop.xlane.xlu0 %711
  %713 = vadd.xlane.f32.xlu0 %v696
  %v714 = vpop.xlane.xlu0 %713
  %715 = vadd.xlane.f32.xlu0 %v697
  %v716 = vpop.xlane.xlu0 %715
  %717 = vadd.xlane.f32.xlu0 %v698
  %v718 = vpop.xlane.xlu0 %717
  %719 = vadd.xlane.f32.xlu0 %v699
  %v720 = vpop.xlane.xlu0 %719
  %721 = vadd.xlane.f32.xlu0 %v700
  %v722 = vpop.xlane.xlu0 %721
  %723 = vadd.xlane.f32.xlu0 %v701
  %v724 = vpop.xlane.xlu0 %723
  %725 = vadd.xlane.f32.xlu0 %v702
  %v726 = vpop.xlane.xlu0 %725
  %727 = vadd.xlane.f32.xlu0 %v703
  %v728 = vpop.xlane.xlu0 %727
  %729 = vadd.xlane.f32.xlu0 %v704
  %v730 = vpop.xlane.xlu0 %729
  %731 = vadd.xlane.f32.xlu0 %v705
  %v732 = vpop.xlane.xlu0 %731
  %733 = vadd.xlane.f32.xlu0 %v706
  %v734 = vpop.xlane.xlu0 %733
  %735 = vadd.xlane.f32.xlu0 %v707
  %v736 = vpop.xlane.xlu0 %735
  %737 = vadd.xlane.f32.xlu0 %v708
  %v738 = vpop.xlane.xlu0 %737
  %739 = vadd.xlane.f32.xlu0 %v709
  %v740 = vpop.xlane.xlu0 %739
  %741 = vadd.xlane.f32.xlu0 %v710
  %v742 = vpop.xlane.xlu0 %741
  %s743 = sld [smem:[#allocation2]]
  %v744 = vstv %s743
  %v745 = vadd.f32 %v712, %v744
  %v746 = vadd.f32 %v714, %v744
  %v747 = vadd.f32 %v716, %v744
  %v748 = vadd.f32 %v718, %v744
  %v749 = vadd.f32 %v720, %v744
  %v750 = vadd.f32 %v722, %v744
  %v751 = vadd.f32 %v724, %v744
  %v752 = vadd.f32 %v726, %v744
  %v753 = vadd.f32 %v728, %v744
  %v754 = vadd.f32 %v730, %v744
  %v755 = vadd.f32 %v732, %v744
  %v756 = vadd.f32 %v734, %v744
  %v757 = vadd.f32 %v736, %v744
  %v758 = vadd.f32 %v738, %v744
  %v759 = vadd.f32 %v740, %v744
  %v760 = vadd.f32 %v742, %v744
  %v777 = vlaneseq
  %v778 = vand.u32 %v777, 127
  %v779 = vlaneseq
  %v780 = vshrl.u32 %v779, 7
  %v781 = vsub.s32 %v778, %v780
  %v782 = vrot.slane %v745, %v781
  %v783 = vadd.s32 %v778, 4294967288
  %v784 = vlaneseq
  %v785 = vshrl.u32 %v784, 7
  %v786 = vsub.s32 %v783, %v785
  %v787 = vrot.slane %v746, %v786
  %vm788 = vcmask 130112
  %v789 = vsel %vm788, %v787, %v782
  %v790 = vadd.s32 %v778, 4294967280
  %v791 = vlaneseq
  %v792 = vshrl.u32 %v791, 7
  %v793 = vsub.s32 %v790, %v792
  %v794 = vrot.slane %v747, %v793
  %vm795 = vcmask 195712
  %v796 = vsel %vm795, %v794, %v789
  %v797 = vadd.s32 %v778, 4294967272
  %v798 = vlaneseq
  %v799 = vshrl.u32 %v798, 7
  %v800 = vsub.s32 %v797, %v799
  %v801 = vrot.slane %v748, %v800
  %vm802 = vcmask 261312
  %v803 = vsel %vm802, %v801, %v796
  %v804 = vadd.s32 %v778, 4294967264
  %v805 = vlaneseq
  %v806 = vshrl.u32 %v805, 7
  %v807 = vsub.s32 %v804, %v806
  %v808 = vrot.slane %v749, %v807
  %vm809 = vcmask 326912
  %v810 = vsel %vm809, %v808, %v803
  %v811 = vadd.s32 %v778, 4294967256
  %v812 = vlaneseq
  %v813 = vshrl.u32 %v812, 7
  %v814 = vsub.s32 %v811, %v813
  %v815 = vrot.slane %v750, %v814
  %vm816 = vcmask 392512
  %v817 = vsel %vm816, %v815, %v810
  %v818 = vadd.s32 %v778, 4294967248
  %v819 = vlaneseq
  %v820 = vshrl.u32 %v819, 7
  %v821 = vsub.s32 %v818, %v820
  %v822 = vrot.slane %v751, %v821
  %vm823 = vcmask 458112
  %v824 = vsel %vm823, %v822, %v817
  %v825 = vadd.s32 %v778, 4294967240
  %v826 = vlaneseq
  %v827 = vshrl.u32 %v826, 7
  %v828 = vsub.s32 %v825, %v827
  %v829 = vrot.slane %v752, %v828
  %vm830 = vcmask 523712
  %v831 = vsel %vm830, %v829, %v824
  %v832 = vadd.s32 %v778, 4294967232
  %v833 = vlaneseq
  %v834 = vshrl.u32 %v833, 7
  %v835 = vsub.s32 %v832, %v834
  %v836 = vrot.slane %v753, %v835
  %vm837 = vcmask 589312
  %v838 = vsel %vm837, %v836, %v831
  %v839 = vadd.s32 %v778, 4294967224
  %v840 = vlaneseq
  %v841 = vshrl.u32 %v840, 7
  %v842 = vsub.s32 %v839, %v841
  %v843 = vrot.slane %v754, %v842
  %vm844 = vcmask 654912
  %v845 = vsel %vm844, %v843, %v838
  %v846 = vadd.s32 %v778, 4294967216
  %v847 = vlaneseq
  %v848 = vshrl.u32 %v847, 7
  %v849 = vsub.s32 %v846, %v848
  %v850 = vrot.slane %v755, %v849
  %vm851 = vcmask 720512
  %v852 = vsel %vm851, %v850, %v845
  %v853 = vadd.s32 %v778, 4294967208
  %v854 = vlaneseq
  %v855 = vshrl.u32 %v854, 7
  %v856 = vsub.s32 %v853, %v855
  %v857 = vrot.slane %v756, %v856
  %vm858 = vcmask 786112
  %v859 = vsel %vm858, %v857, %v852
  %v860 = vadd.s32 %v778, 4294967200
  %v861 = vlaneseq
  %v862 = vshrl.u32 %v861, 7
  %v863 = vsub.s32 %v860, %v862
  %v864 = vrot.slane %v757, %v863
  %vm865 = vcmask 851712
  %v866 = vsel %vm865, %v864, %v859
  %v867 = vadd.s32 %v778, 4294967192
  %v868 = vlaneseq
  %v869 = vshrl.u32 %v868, 7
  %v870 = vsub.s32 %v867, %v869
  %v871 = vrot.slane %v758, %v870
  %vm872 = vcmask 917312
  %v873 = vsel %vm872, %v871, %v866
  %v874 = vadd.s32 %v778, 4294967184
  %v875 = vlaneseq
  %v876 = vshrl.u32 %v875, 7
  %v877 = vsub.s32 %v874, %v876
  %v878 = vrot.slane %v759, %v877
  %vm879 = vcmask 982912
  %v880 = vsel %vm879, %v878, %v873
  %v881 = vadd.s32 %v778, 4294967176
  %v882 = vlaneseq
  %v883 = vshrl.u32 %v882, 7
  %v884 = vsub.s32 %v881, %v883
  %v885 = vrot.slane %v760, %v884
  %vm886 = vcmask 1048512
  %v887 = vsel %vm886, %v885, %v880
  %889 = vst [vmem:[%s9] sm:$0x1] %v887
  // Predicated region
  $region38: #{deepncf_forward.1} parent=0 // pred_check
    _
  $region39: #{deepncf_forward.1} parent=0 // pred_check_branch
    %891 = sbr.rel (0) target = $region41
  $region40: #{deepncf_forward.1} parent=0 // pred_region
    _
  $region41: #{deepncf_forward.1} parent=0 // pred_fallthru
    _
  // Predicated region
  $region42: #{deepncf_forward.1} parent=0 // pred_check
    _
  $region43: #{deepncf_forward.1} parent=0 // pred_check_branch
    %893 = sbr.rel (0) target = $region45
  $region44: #{deepncf_forward.1} parent=0 // pred_region
    _
  $region45: #{deepncf_forward.1} parent=0 // pred_fallthru
    _

</llo_original>
